<compile_context>
chip_gen: v7x
topology: tpu7x:2x2x1
jax: 0.10.0
libtpu: 0.0.40
codegen_flags: <defaults>
</compile_context>

<pallas_src>
import math
from functools import partial

import jax
import jax.numpy as jnp
from jax.experimental import pallas as pl
from jax.experimental.pallas import tpu as pltpu


# ----------------------------------------------------------------------------
# Irreps description: list of (multiplicity, l, parity). e.g. "8x0e + 4x1o + 2x2e"
# ----------------------------------------------------------------------------
IRREPS = [(8, 0, 1), (4, 1, -1), (2, 2, 1)]


def irreps_info(irreps):
    num_irreps = sum(mul for mul, _, _ in irreps)
    num_scalar = sum(mul for mul, l, p in irreps if l == 0 and p == 1)
    dim = sum(mul * (2 * l + 1) for mul, l, _ in irreps)
    return num_irreps, num_scalar, dim


def slab_layout(dim):
    """Lane-dense slab layout: pack rows so the last dim is a multiple of 128."""
    rows_per_slab = math.lcm(dim, 128) // dim   # 64 for dim=30
    return rows_per_slab, rows_per_slab * dim   # (64, 1920) for dim=30


def expand_params(gamma, beta, irreps, dtype=jnp.float32):
    """Expand per-irrep gamma / per-scalar beta to lane-dense (1, slab_width) vectors.

    Call once per parameter update (NOT per forward). Returns f32 slabs by
    default so the FMA runs in f32 even for low-precision activations.
    """
    num_irreps, num_scalar, dim = irreps_info(irreps)
    rows_per_slab, slab_width = slab_layout(dim)

    repeats = []
    for mul, l, _ in irreps:
        repeats.extend([2 * l + 1] * mul)
    repeats = jnp.asarray(repeats, dtype=jnp.int32)

    scale = jnp.repeat(
        gamma.reshape(-1).astype(dtype), repeats, total_repeat_length=dim
    )
    shift = (
        jnp.zeros((dim,), dtype=dtype)
        .at[:num_scalar]
        .set(beta.reshape(-1).astype(dtype))
    )
    scale_slab = jnp.tile(scale.reshape(1, dim), (1, rows_per_slab))
    shift_slab = jnp.tile(shift.reshape(1, dim), (1, rows_per_slab))
    return scale_slab, shift_slab


# ----------------------------------------------------------------------------
# Pallas kernel: y = x * scale + shift   (scale/shift broadcast over rows, f32 math)
# ----------------------------------------------------------------------------
def ssf_kernel(x_ref, scale_ref, shift_ref, o_ref):
    x = x_ref[...].astype(jnp.float32)
    o_ref[...] = (x * scale_ref[...] + shift_ref[...]).astype(o_ref.dtype)


def _min_sublane(dtype):
    itemsize = jnp.dtype(dtype).itemsize
    return {4: 8, 2: 16, 1: 32}.get(itemsize, 8)


def _vmem_capacity_bytes():
    try:
        return int(pltpu.get_tpu_info().vmem_capacity_bytes)
    except Exception:
        return 64 * 1024 * 1024  # conservative (v7x per-TC)


def ssf_forward(x, scale_slab, shift_slab):
    """y = x * scale + shift on a lane-dense slab layout.

    x:          (N, D)            node features (flattened irreps)
    scale_slab: (1, slab_width)   per-feature gamma expansion, tiled to slab width
    shift_slab: (1, slab_width)   per-feature beta expansion, tiled to slab width
    """
    N, D = x.shape
    dtype = x.dtype
    itemsize = jnp.dtype(dtype).itemsize

    rows_per_slab, slab_width = slab_layout(D)
    assert scale_slab.shape == (1, slab_width) and shift_slab.shape == (1, slab_width)

    slab_rows = -(-N // rows_per_slab)          # cdiv
    n_pad = slab_rows * rows_per_slab
    padded = n_pad != N
    if padded:
        # Only up to rows_per_slab-1 extra rows (<= 63 for D=30).
        # TODO(synk): fuse into the producer kernel to remove these extra HBM
        # passes entirely; on the divisible fast path they never trigger.
        x = jnp.pad(x, ((0, n_pad - N), (0, 0)))
    x_slab = x.reshape(slab_rows, slab_width)   # free metadata op

    # --- tile sizing: by bytes, generation-aware -----------------------------
    min_sub = _min_sublane(dtype)
    vmem_cap = _vmem_capacity_bytes()
    if vmem_cap >= 100 * 1024 * 1024:           # v5e / v6e class (128 MiB VMEM)
        target_block_bytes = 12 * 1024 * 1024
    else:                                       # v7x class (64 MiB VMEM per TC)
        target_block_bytes = 8 * 1024 * 1024

    if slab_rows <= min_sub:
        # Single block equal to the full array (no (8,128) divisibility issue).
        tile_rows = slab_rows
    else:
        tile_rows = max(
            (target_block_bytes // (slab_width * itemsize)) // min_sub * min_sub,
            min_sub,
        )
        # Keep >= 2 grid steps whenever possible so v7x's two TensorCores both
        # get work (no effect on single-TC v5e/v6e).
        half = -(-slab_rows // 2)
        half = -(-half // min_sub) * min_sub
        tile_rows = min(tile_rows, max(half, min_sub))

    grid_rows = pl.cdiv(slab_rows, tile_rows)   # ragged last block is legal

    block_bytes = tile_rows * slab_width * itemsize
    vmem_limit = int(
        min(max(6 * block_bytes, 8 * 1024 * 1024), (3 * vmem_cap) // 4)
    )

    out_slab = pl.pallas_call(
        ssf_kernel,
        out_shape=jax.ShapeDtypeStruct((slab_rows, slab_width), dtype),
        grid=(grid_rows,),
        in_specs=[
            pl.BlockSpec((tile_rows, slab_width), lambda i: (i, 0)),  # x row tile
            pl.BlockSpec((1, slab_width), lambda i: (0, 0)),          # scale (f32)
            pl.BlockSpec((1, slab_width), lambda i: (0, 0)),          # shift (f32)
        ],
        out_specs=pl.BlockSpec((tile_rows, slab_width), lambda i: (i, 0)),
        compiler_params=pltpu.CompilerParams(
            dimension_semantics=("parallel",),
            vmem_limit_bytes=vmem_limit,
        ),
    )(x_slab, scale_slab, shift_slab)

    out = out_slab.reshape(n_pad, D)            # free metadata op
    if padded:
        out = out[:N]
    return out


# ----------------------------------------------------------------------------
# Reference (pure JAX) for verification
# ----------------------------------------------------------------------------
def ssf_reference(x, scale_vec, shift_vec):
    return (x.astype(jnp.float32) * scale_vec + shift_vec).astype(x.dtype)


if __name__ == "__main__":
    num_irreps, num_scalar, dim = irreps_info(IRREPS)  # 14, 8, 30
    rows_per_slab, slab_width = slab_layout(dim)       # 64, 1920

    key = jax.random.PRNGKey(0)
    k_x1, k_x2, k_g, k_b = jax.random.split(key, 4)

    # Parameters: module init is gamma=ones, beta=zeros; perturb deterministically
    # so the kernel does non-trivial work. Expanded ONCE, outside the forward.
    gamma = jnp.ones((1, num_irreps), dtype=jnp.float32) + 0.1 * jax.random.normal(
        k_g, (1, num_irreps), dtype=jnp.float32
    )
    beta = 0.1 * jax.random.normal(k_b, (1, num_scalar), dtype=jnp.float32)
    scale_slab, shift_slab = expand_params(gamma, beta, IRREPS, dtype=jnp.float32)
    scale_vec = scale_slab[:, :dim]
    shift_vec = shift_slab[:, :dim]

    fwd = jax.jit(ssf_forward)

    # Case 1: small N, not a multiple of rows_per_slab (exercises the tiny-pad path).
    N1 = 16
    x1 = jax.random.normal(k_x1, (N1, dim), dtype=jnp.float32)
    out1 = jax.block_until_ready(fwd(x1, scale_slab, shift_slab))
    ref1 = ssf_reference(x1, scale_vec, shift_vec)
    assert out1.shape == (N1, dim)
    assert jnp.allclose(out1, ref1, atol=1e-5, rtol=1e-5), "mismatch vs reference (N=16)"

    # Case 2: N a multiple of rows_per_slab with an odd slab-row count
    # (exercises the no-pad fast path, multi-step grid and ragged last block).
    N2 = 17 * rows_per_slab  # 1088
    x2 = jax.random.normal(k_x2, (N2, dim), dtype=jnp.float32)
    out2 = jax.block_until_ready(fwd(x2, scale_slab, shift_slab))
    ref2 = ssf_reference(x2, scale_vec, shift_vec)
    assert out2.shape == (N2, dim)
    assert jnp.allclose(out2, ref2, atol=1e-5, rtol=1e-5), "mismatch vs reference (N=1088)"

    print("KERNEL_OK")
</pallas_src>

<mosaic_0001>
module attributes {stable_mosaic.version = 11 : i64} {
  func.func @ssf_kernel(%arg0: i32, %arg1: memref<1x1920xf32, #tpu.memory_space<vmem>>, %arg2: memref<1x1920xf32, #tpu.memory_space<vmem>>, %arg3: memref<1x1920xf32, #tpu.memory_space<vmem>>, %arg4: memref<1x1920xf32, #tpu.memory_space<vmem>>) attributes {dimension_semantics = [#tpu.dimension_semantics<parallel>], iteration_bounds = array<i64: 1>, scalar_prefetch = 0 : i64, scratch_operands = 0 : i64, tpu.core_type = #tpu.core_type<tc>, window_params = [{transform_indices = @transform_0, window_bounds = array<i64: 1, 1920>}, {pipeline_mode = #tpu.pipeline_mode<synchronous>, transform_indices = @transform_1, window_bounds = array<i64: 1, 1920>}, {pipeline_mode = #tpu.pipeline_mode<synchronous>, transform_indices = @transform_2, window_bounds = array<i64: 1, 1920>}, {transform_indices = @transform_3, window_bounds = array<i64: 1, 1920>}]} {
    %c0 = arith.constant 0 : index
    %c0_0 = arith.constant 0 : index
    %0 = vector.load %arg1[%c0, %c0_0] : memref<1x1920xf32, #tpu.memory_space<vmem>>, vector<1x1920xf32>
    %c0_1 = arith.constant 0 : index
    %c0_2 = arith.constant 0 : index
    %1 = vector.load %arg2[%c0_1, %c0_2] : memref<1x1920xf32, #tpu.memory_space<vmem>>, vector<1x1920xf32>
    %2 = arith.mulf %0, %1 : vector<1x1920xf32>
    %c0_3 = arith.constant 0 : index
    %c0_4 = arith.constant 0 : index
    %3 = vector.load %arg3[%c0_3, %c0_4] : memref<1x1920xf32, #tpu.memory_space<vmem>>, vector<1x1920xf32>
    %4 = arith.addf %2, %3 : vector<1x1920xf32>
    %c0_5 = arith.constant 0 : index
    %c0_6 = arith.constant 0 : index
    %5 = vector.load %arg4[%c0_5, %c0_6] : memref<1x1920xf32, #tpu.memory_space<vmem>>, vector<1x1920xf32>
    tpu.vector_store %arg4[%c0_5, %c0_6], %4 {strides = array<i32>} : memref<1x1920xf32, #tpu.memory_space<vmem>>, vector<1x1920xf32>,
    return
  }
  func.func @transform_0(%arg0: i32) -> (i32, i32) {
    %c0_i32 = arith.constant 0 : i32
    %c0_i32_0 = arith.constant 0 : i32
    return %arg0, %c0_i32 : i32, i32
  }
  func.func @transform_1(%arg0: i32) -> (i32, i32) {
    %c0_i32 = arith.constant 0 : i32
    %c0_i32_0 = arith.constant 0 : i32
    %c0_i32_1 = arith.constant 0 : i32
    return %c0_i32, %c0_i32_0 : i32, i32
  }
  func.func @transform_2(%arg0: i32) -> (i32, i32) {
    %c0_i32 = arith.constant 0 : i32
    %c0_i32_0 = arith.constant 0 : i32
    %c0_i32_1 = arith.constant 0 : i32
    return %c0_i32, %c0_i32_0 : i32, i32
  }
  func.func @transform_3(%arg0: i32) -> (i32, i32) {
    %c0_i32 = arith.constant 0 : i32
    %c0_i32_0 = arith.constant 0 : i32
    return %arg0, %c0_i32 : i32, i32
  }
}

</mosaic_0001>

<llo_original>
// kernel: ssf_forward.1
$region0: #{ssf_forward.1}
  #allocation0 [shape = 'u32[]', space=smem, size = 0x4, offset = 0x4, fixed_abs, tag = 'smem constant byte address 0x4 - core index']
  #allocation1 [shape = 'u32[144,128]{1,0:T(1,128)}', space=vmem, size = 0x12000, scoped, tag = 'internal scratch']
  %s0 = inlined_call_operand.vmem [shape: f32[1,1920], index: 0, kind: input, shape index: {}]
  %s1 = inlined_call_operand.vmem [shape: f32[1,1920], index: 1, kind: input, shape index: {}]
  %s2 = inlined_call_operand.vmem [shape: f32[1,1920], index: 2, kind: input, shape index: {}]
  %s3 = inlined_call_operand.vmem [shape: f32[1,1920], index: 3, kind: output, shape index: {}]
  %s4 = sld [smem:[#allocation0]]
  $region22: #{ssf_forward.1} parent=0
    _
  %s6 = ssub.s32 1, %s4
  %s7 = scalar_select 0, %s6, %s4
  // Predicated region
  $region2: #{ssf_forward.1} parent=0 // pred_check
    _
  $region3: #{ssf_forward.1} parent=0 // pred_check_branch
    %9 = sbr.rel (0) target = $region5
  $region4: #{ssf_forward.1} parent=0 // pred_region
    _
  $region5: #{ssf_forward.1} parent=0 // pred_fallthru
    _
  // Predicated region
  $region6: #{ssf_forward.1} parent=0 // pred_check
    _
  $region7: #{ssf_forward.1} parent=0 // pred_check_branch
    %11 = sbr.rel (0) target = $region9
  $region8: #{ssf_forward.1} parent=0 // pred_region
    _
  $region9: #{ssf_forward.1} parent=0 // pred_fallthru
    _
  // Predicated region
  $region10: #{ssf_forward.1} parent=0 // pred_check
    _
  $region11: #{ssf_forward.1} parent=0 // pred_check_branch
    %13 = sbr.rel (0) target = $region13
  $region12: #{ssf_forward.1} parent=0 // pred_region
    _
  $region13: #{ssf_forward.1} parent=0 // pred_fallthru
    _
  %v14 = vld [vmem:[%s0] sm:$0xff]
  %v15 = vld [vmem:[%s0 + $0x8] sm:$0xff]
  %v16 = vld [vmem:[%s1] sm:$0xff]
  %v17 = vld [vmem:[%s1 + $0x8] sm:$0xff]
  %v18 = vmul.f32 %v14, %v16
  %v19 = vmul.f32 %v15, %v17
  %v20 = vld [vmem:[%s2] sm:$0xff]
  %v21 = vld [vmem:[%s2 + $0x8] sm:$0xff]
  %v22 = vadd.f32 %v18, %v20
  %v23 = vadd.f32 %v19, %v21
  %24 = vst [vmem:[%s3] sm:$0xff] %v22
  %v25 = vlaneseq
  %vm26 = vcmp.ge.s32.totalorder %v25, 0
  %vm27 = vcmp.lt.s32.totalorder %v25, 896
  %vm28 = vmand %vm26, %vm27
  %29 = vst.msk [vmem:[%s3 + $0x8] sm:$0x7f] %vm28, %v23
  // Predicated region
  $region14: #{ssf_forward.1} parent=0 // pred_check
    _
  $region15: #{ssf_forward.1} parent=0 // pred_check_branch
    %31 = sbr.rel (0) target = $region17
  $region16: #{ssf_forward.1} parent=0 // pred_region
    _
  $region17: #{ssf_forward.1} parent=0 // pred_fallthru
    _
  // Predicated region
  $region18: #{ssf_forward.1} parent=0 // pred_check
    _
  $region19: #{ssf_forward.1} parent=0 // pred_check_branch
    %33 = sbr.rel (0) target = $region21
  $region20: #{ssf_forward.1} parent=0 // pred_region
    _
  $region21: #{ssf_forward.1} parent=0 // pred_fallthru
    _

</llo_original>
